<compile_context>
chip_gen: v7x
topology: tpu7x:2x2x1
jax: 0.10.0
libtpu: 0.0.40
codegen_flags: <defaults>
</compile_context>

<pallas_src>
import jax
import jax.numpy as jnp
import numpy as np
from jax.experimental import pallas as pl
from jax.experimental.pallas import tpu as pltpu


def encoder_kernel(x_ref, w1_ref, b1_ref, w2_ref, b2_ref, out_ref):
    two_z = out_ref.shape[0]
    z_dim = two_z // 2

    xT = x_ref[...]                        # (2, TB)   batch on lanes (squeezed tile)
    w1 = w1_ref[...]                       # (H, 2)    fc1 weight (PyTorch layout)

    # fc1 on the VPU: K=2 contraction as two broadcast FMAs.
    # (For large H, pre-broadcasting b1 / folding it into the FMA operands would
    #  avoid re-broadcasting each grid step; at H=32 this is noise.)
    h = w1[:, 0:1] * xT[0:1, :] + w1[:, 1:2] * xT[1:2, :] + b1_ref[...]   # (H, TB)

    # Softplus, overflow-safe form (== log1p(exp(h)) for all h; matches
    # torch.nn.Softplus to fp32 tolerance, no threshold branch).
    hidden = jnp.maximum(h, 0.0) + jnp.log1p(jnp.exp(-jnp.abs(h)))        # (H, TB)

    # Fused fc21/fc22: one MXU pass producing [z_loc rows ; log z_scale rows].
    # MXU note: (2Z, H) x (H, TB) fills <=16 of the 128/256 MXU rows — acceptable
    # since this kernel is not MXU-bound and it keeps VPU slots free.
    out = jnp.dot(w2_ref[...], hidden,
                  preferred_element_type=jnp.float32,
                  precision=jax.lax.Precision.HIGHEST) + b2_ref[...]      # (2Z, TB)

    # exp only on the z_scale half (EUP is the binding slot on v7x).
    # NOTE: the split store is sublane-aligned iff z_dim % 8 == 0 (f32); it stays
    # correct for other z_dim but degrades to masked stores.
    out_ref[pl.ds(0, z_dim), :] = out[:z_dim, :].astype(out_ref.dtype)
    out_ref[pl.ds(z_dim, z_dim), :] = jnp.exp(out[z_dim:, :]).astype(out_ref.dtype)


def _round_up(n, m):
    return ((n + m - 1) // m) * m


def _pick_tb(batch):
    """Batch tile (lane extent). Multiple of 128, as large as possible (DMA
    efficiency, ~0.35us fixed cost per grid step) but keeping >= 2 tiles when the
    batch allows so the 'parallel' axis can shard across both TCs on v7x.
    Per-tile VMEM is ~(2 + H + 2Z) * tb * 4 bytes (< 1 MiB even double-buffered)."""
    base = _round_up(max(batch, 1), 128)
    return max(128, min(1024, (base // 2) // 128 * 128))


def encoder_forward(x, params, tb=None, batch_major_out=True):
    """x: (B, 2) float32.
    params: {'w1': (H,2), 'b1': (H,1), 'w2': (2Z,H), 'b2': (2Z,1)}.
    Returns (z_loc, z_scale): (B, z_dim) each if batch_major_out, else (z_dim, B)
    batch-on-lanes slabs (avoids the epilogue transpose HBM round-trip)."""
    B = x.shape[0]
    H = params["w1"].shape[0]
    two_z = params["w2"].shape[0]
    z_dim = two_z // 2

    if tb is None:
        tb = _pick_tb(B)
    assert tb % 128 == 0
    padded_B = _round_up(max(B, 1), tb)
    n_tiles = padded_B // tb

    # Layout plumbing in the wrapper (cheap XLA ops, fused under the caller's jit):
    # pad batch, move it to the lane axis, fold into (n_tiles, 2, tb) so each
    # grid step's input tile is one contiguous DMA.
    xp = jnp.zeros((padded_B, 2), jnp.float32).at[:B, :].set(x.astype(jnp.float32))
    x3 = xp.reshape(n_tiles, tb, 2).transpose(0, 2, 1)          # (T, 2, tb)

    out = pl.pallas_call(
        encoder_kernel,
        out_shape=jax.ShapeDtypeStruct((two_z, padded_B), jnp.float32),
        grid_spec=pltpu.PrefetchScalarGridSpec(
            num_scalar_prefetch=0,
            grid=(n_tiles,),
            in_specs=[
                pl.BlockSpec((None, 2, tb), lambda i: (i, 0, 0)),   # x tile (contig DMA)
                pl.BlockSpec((H, 2), lambda i: (0, 0)),             # w1 (resident)
                pl.BlockSpec((H, 1), lambda i: (0, 0)),             # b1 (resident)
                pl.BlockSpec((two_z, H), lambda i: (0, 0)),         # fused w2 (resident)
                pl.BlockSpec((two_z, 1), lambda i: (0, 0)),         # fused b2 (resident)
            ],
            out_specs=pl.BlockSpec((two_z, tb), lambda i: (0, i)),  # lane-dense store
        ),
        compiler_params=pltpu.CompilerParams(
            dimension_semantics=("parallel",),   # shard batch tiles across TCs (v7x)
            vmem_limit_bytes=32 * 1024 * 1024,   # far above actual use on all gens
        ),
    )(x3, params["w1"], params["b1"], params["w2"], params["b2"])

    if batch_major_out:
        # PyTorch-convention (B, z_dim) outputs; keep inside the caller's jit so
        # the transpose can fuse with the consumer.
        return out[:z_dim, :B].T, out[z_dim:, :B].T
    # Batch-on-lanes (z_dim, B) slabs; reparameterization loc + scale*eps works
    # directly in this layout with no extra HBM pass.
    return out[:z_dim, :B], out[z_dim:, :B]


def init_params(key, hidden_dim, z_dim):
    """Deterministic init mimicking torch.nn.Linear (uniform +-1/sqrt(fan_in)).
    Weights kept in PyTorch (out_features, in_features) layout; fc21/fc22 fused."""
    def linear(key, fan_in, fan_out):
        k1, k2 = jax.random.split(key)
        bound = 1.0 / np.sqrt(fan_in)
        w = jax.random.uniform(k1, (fan_out, fan_in), jnp.float32, -bound, bound)
        b = jax.random.uniform(k2, (fan_out, 1), jnp.float32, -bound, bound)
        return w, b

    k1, k2, k3 = jax.random.split(key, 3)
    w1, b1 = linear(k1, 2, hidden_dim)          # (H, 2), (H, 1)
    w21, b21 = linear(k2, hidden_dim, z_dim)    # (Z, H), (Z, 1)
    w22, b22 = linear(k3, hidden_dim, z_dim)
    w2 = jnp.concatenate([w21, w22], axis=0)    # (2Z, H)
    b2 = jnp.concatenate([b21, b22], axis=0)    # (2Z, 1)
    return {"w1": w1, "b1": b1, "w2": w2, "b2": b2}


def reference_forward(x, p):
    """Plain-JAX reference matching the PyTorch Encoder.forward semantics."""
    h = jax.nn.softplus(x @ p["w1"].T + p["b1"].T)     # (B, H)
    out = h @ p["w2"].T + p["b2"].T                    # (B, 2Z)
    z = p["w2"].shape[0] // 2
    return out[:, :z], jnp.exp(out[:, z:])


if __name__ == "__main__":
    batch, hidden_dim, z_dim = 8, 32, 8

    key = jax.random.PRNGKey(0)
    k_x, k_p = jax.random.split(key)
    x = jax.random.normal(k_x, (batch, 2), jnp.float32)
    params = init_params(k_p, hidden_dim, z_dim)

    fwd = jax.jit(lambda xx: encoder_forward(xx, params))
    z_loc, z_scale = fwd(x)
    jax.block_until_ready((z_loc, z_scale))

    # sanity check against plain-JAX reference
    ref_loc, ref_scale = reference_forward(x, params)
    np.testing.assert_allclose(np.asarray(z_loc), np.asarray(ref_loc),
                               rtol=1e-5, atol=1e-5)
    np.testing.assert_allclose(np.asarray(z_scale), np.asarray(ref_scale),
                               rtol=1e-5, atol=1e-5)

    # also exercise the fused (no-epilogue-transpose) output layout
    ll, ss = encoder_forward(x, params, batch_major_out=False)
    jax.block_until_ready((ll, ss))
    np.testing.assert_allclose(np.asarray(ll.T), np.asarray(ref_loc),
                               rtol=1e-5, atol=1e-5)
    np.testing.assert_allclose(np.asarray(ss.T), np.asarray(ref_scale),
                               rtol=1e-5, atol=1e-5)

    print("KERNEL_OK")
</pallas_src>

<mosaic_0001>
module attributes {stable_mosaic.version = 11 : i64} {
  func.func @encoder_kernel(%arg0: i32, %arg1: memref<1x2x128xf32, #tpu.memory_space<vmem>>, %arg2: memref<32x2xf32, #tpu.memory_space<vmem>>, %arg3: memref<32x1xf32, #tpu.memory_space<vmem>>, %arg4: memref<16x32xf32, #tpu.memory_space<vmem>>, %arg5: memref<16x1xf32, #tpu.memory_space<vmem>>, %arg6: memref<16x128xf32, #tpu.memory_space<vmem>>) attributes {dimension_semantics = [#tpu.dimension_semantics<parallel>], iteration_bounds = array<i64: 1>, scalar_prefetch = 0 : i64, scratch_operands = 0 : i64, tpu.core_type = #tpu.core_type<tc>, window_params = [{transform_indices = @transform_0, window_bounds = array<i64: 1, 2, 128>}, {pipeline_mode = #tpu.pipeline_mode<synchronous>, transform_indices = @transform_1, window_bounds = array<i64: 32, 2>}, {pipeline_mode = #tpu.pipeline_mode<synchronous>, transform_indices = @transform_2, window_bounds = array<i64: 32, 1>}, {pipeline_mode = #tpu.pipeline_mode<synchronous>, transform_indices = @transform_3, window_bounds = array<i64: 16, 32>}, {pipeline_mode = #tpu.pipeline_mode<synchronous>, transform_indices = @transform_4, window_bounds = array<i64: 16, 1>}, {transform_indices = @transform_5, window_bounds = array<i64: 16, 128>}]} {
    %c0 = arith.constant 0 : index
    %c0_0 = arith.constant 0 : index
    %c0_1 = arith.constant 0 : index
    %0 = vector.load %arg1[%c0, %c0_0, %c0_1] : memref<1x2x128xf32, #tpu.memory_space<vmem>>, vector<1x2x128xf32>
    %1 = vector.shape_cast %0 : vector<1x2x128xf32> to vector<2x128xf32>
    %c0_2 = arith.constant 0 : index
    %c0_3 = arith.constant 0 : index
    %2 = vector.load %arg2[%c0_2, %c0_3] : memref<32x2xf32, #tpu.memory_space<vmem>>, vector<32x2xf32>
    %3 = vector.extract_strided_slice %2 {offsets = [0, 0], sizes = [32, 1], strides = [1, 1]} : vector<32x2xf32> to vector<32x1xf32>
    %4 = vector.extract_strided_slice %1 {offsets = [0, 0], sizes = [1, 128], strides = [1, 1]} : vector<2x128xf32> to vector<1x128xf32>
    %5 = vector.broadcast %3 : vector<32x1xf32> to vector<32x128xf32>
    %6 = vector.broadcast %4 : vector<1x128xf32> to vector<32x128xf32>
    %7 = arith.mulf %5, %6 : vector<32x128xf32>
    %8 = vector.extract_strided_slice %2 {offsets = [0, 1], sizes = [32, 1], strides = [1, 1]} : vector<32x2xf32> to vector<32x1xf32>
    %9 = vector.extract_strided_slice %1 {offsets = [1, 0], sizes = [1, 128], strides = [1, 1]} : vector<2x128xf32> to vector<1x128xf32>
    %10 = vector.broadcast %8 : vector<32x1xf32> to vector<32x128xf32>
    %11 = vector.broadcast %9 : vector<1x128xf32> to vector<32x128xf32>
    %12 = arith.mulf %10, %11 : vector<32x128xf32>
    %13 = arith.addf %7, %12 : vector<32x128xf32>
    %c0_4 = arith.constant 0 : index
    %c0_5 = arith.constant 0 : index
    %14 = vector.load %arg3[%c0_4, %c0_5] : memref<32x1xf32, #tpu.memory_space<vmem>>, vector<32x1xf32>
    %15 = vector.broadcast %14 : vector<32x1xf32> to vector<32x128xf32>
    %16 = arith.addf %13, %15 : vector<32x128xf32>
    %cst = arith.constant 0.000000e+00 : f32
    %17 = vector.broadcast %cst : f32 to vector<32x128xf32>
    %18 = arith.maximumf %16, %17 : vector<32x128xf32>
    %19 = math.absf %16 : vector<32x128xf32>
    %cst_6 = arith.constant 0.000000e+00 : f32
    %20 = vector.broadcast %cst_6 : f32 to vector<32x128xf32>
    %21 = arith.subf %20, %19 : vector<32x128xf32>
    %22 = math.exp %21 : vector<32x128xf32>
    %23 = math.log1p %22 : vector<32x128xf32>
    %24 = arith.addf %18, %23 : vector<32x128xf32>
    %c0_7 = arith.constant 0 : index
    %c0_8 = arith.constant 0 : index
    %25 = vector.load %arg4[%c0_7, %c0_8] : memref<16x32xf32, #tpu.memory_space<vmem>>, vector<16x32xf32>
    %cst_9 = arith.constant dense<0.000000e+00> : vector<16x128xf32>
    %26 = tpu.matmul %25, %24, %cst_9 {dimension_numbers = #tpu.dot_dimension_numbers<[1], [0], [0], [1], [0, 0, 1, 1], [], []>, precision = #tpu.contract_precision<fp32>} : vector<16x32xf32>, vector<32x128xf32>, vector<16x128xf32> -> vector<16x128xf32>
    %c0_10 = arith.constant 0 : index
    %c0_11 = arith.constant 0 : index
    %27 = vector.load %arg5[%c0_10, %c0_11] : memref<16x1xf32, #tpu.memory_space<vmem>>, vector<16x1xf32>
    %28 = vector.broadcast %27 : vector<16x1xf32> to vector<16x128xf32>
    %29 = arith.addf %26, %28 : vector<16x128xf32>
    %30 = vector.extract_strided_slice %29 {offsets = [0, 0], sizes = [8, 128], strides = [1, 1]} : vector<16x128xf32> to vector<8x128xf32>
    %c0_12 = arith.constant 0 : index
    %c0_13 = arith.constant 0 : index
    %31 = vector.load %arg6[%c0_12, %c0_13] : memref<16x128xf32, #tpu.memory_space<vmem>>, vector<8x128xf32>
    tpu.vector_store %arg6[%c0_12, %c0_13], %30 {strides = array<i32>} : memref<16x128xf32, #tpu.memory_space<vmem>>, vector<8x128xf32>,
    %32 = vector.extract_strided_slice %29 {offsets = [8, 0], sizes = [8, 128], strides = [1, 1]} : vector<16x128xf32> to vector<8x128xf32>
    %33 = math.exp %32 : vector<8x128xf32>
    %c8 = arith.constant 8 : index
    %c0_14 = arith.constant 0 : index
    %34 = vector.load %arg6[%c8, %c0_14] : memref<16x128xf32, #tpu.memory_space<vmem>>, vector<8x128xf32>
    tpu.vector_store %arg6[%c8, %c0_14], %33 {strides = array<i32>} : memref<16x128xf32, #tpu.memory_space<vmem>>, vector<8x128xf32>,
    return
  }
  func.func @transform_0(%arg0: i32) -> (i32, i32, i32) {
    %c0_i32 = arith.constant 0 : i32
    %c0_i32_0 = arith.constant 0 : i32
    %c0_i32_1 = arith.constant 0 : i32
    return %arg0, %c0_i32, %c0_i32_0 : i32, i32, i32
  }
  func.func @transform_1(%arg0: i32) -> (i32, i32) {
    %c0_i32 = arith.constant 0 : i32
    %c0_i32_0 = arith.constant 0 : i32
    %c0_i32_1 = arith.constant 0 : i32
    return %c0_i32, %c0_i32_0 : i32, i32
  }
  func.func @transform_2(%arg0: i32) -> (i32, i32) {
    %c0_i32 = arith.constant 0 : i32
    %c0_i32_0 = arith.constant 0 : i32
    %c0_i32_1 = arith.constant 0 : i32
    return %c0_i32, %c0_i32_0 : i32, i32
  }
  func.func @transform_3(%arg0: i32) -> (i32, i32) {
    %c0_i32 = arith.constant 0 : i32
    %c0_i32_0 = arith.constant 0 : i32
    %c0_i32_1 = arith.constant 0 : i32
    return %c0_i32, %c0_i32_0 : i32, i32
  }
  func.func @transform_4(%arg0: i32) -> (i32, i32) {
    %c0_i32 = arith.constant 0 : i32
    %c0_i32_0 = arith.constant 0 : i32
    %c0_i32_1 = arith.constant 0 : i32
    return %c0_i32, %c0_i32_0 : i32, i32
  }
  func.func @transform_5(%arg0: i32) -> (i32, i32) {
    %c0_i32 = arith.constant 0 : i32
    %c0_i32_0 = arith.constant 0 : i32
    return %c0_i32, %arg0 : i32, i32
  }
}

</mosaic_0001>

<llo_original>
// kernel: _lambda_.1
$region0: #{_lambda_.1}
  #allocation0 [shape = 'u32[]', space=smem, size = 0x4, offset = 0x4, fixed_abs, tag = 'smem constant byte address 0x4 - core index']
  #allocation1 [shape = 'u32[144,128]{1,0:T(1,128)}', space=vmem, size = 0x12000, scoped, tag = 'internal scratch']
  %s0 = inlined_call_operand.vmem [shape: f32[1,2,128], index: 0, kind: input, shape index: {}]
  %s1 = inlined_call_operand.hbm [shape: f32[32,2], index: 1, kind: input, shape index: {}]
  %s2 = inlined_call_operand.hbm [shape: f32[32,1], index: 2, kind: input, shape index: {}]
  %s3 = inlined_call_operand.hbm [shape: f32[16,32], index: 3, kind: input, shape index: {}]
  %s4 = inlined_call_operand.vmem [shape: f32[16,1], index: 4, kind: input, shape index: {}]
  %s5 = inlined_call_operand.vmem [shape: f32[16,128], index: 5, kind: output, shape index: {}]
  %s6 = sld [smem:[#allocation0]]
  $region42: #{_lambda_.1} parent=0
    _
  %s8 = ssub.s32 1, %s6
  %s9 = scalar_select 0, %s8, %s6
  $region1: #{_lambda_.1} parent=0
    #allocation2 [shape = 'u8[16384]{0}', space=vmem, size = 0x4000, scoped, tag = 'input window, operand 1, single buffered']
    #allocation3 [shape = 's32[1]{0}', space=sflag, size = 0x4, scoped, tag = 'scoped memory for _lambda_.1']
    #allocation4 [shape = 'u8[16384]{0}', space=vmem, size = 0x4000, scoped, tag = 'input window, operand 2, single buffered']
    #allocation5 [shape = 's32[1]{0}', space=sflag, size = 0x4, scoped, tag = 'scoped memory for _lambda_.1']
    #allocation6 [shape = 'u8[8192]{0}', space=vmem, size = 0x2000, scoped, tag = 'input window, operand 3, single buffered']
    %10 = vsyncpa [#allocation3], 0
    %11 = vsyncpa [#allocation5], 0
    // Predicated region
    $region2: #{_lambda_.1} parent=1 // pred_check
      _
    $region3: #{_lambda_.1} parent=1 // pred_check_branch
      %13 = sbr.rel (0) target = $region5
    $region4: #{_lambda_.1} parent=1 // pred_region
      _
    $region5: #{_lambda_.1} parent=1 // pred_fallthru
      _
    // Predicated region
    $region6: #{_lambda_.1} parent=1 // pred_check
      _
    $region7: #{_lambda_.1} parent=1 // pred_check_branch
      %15 = sbr.rel (0) target = $region9
    $region8: #{_lambda_.1} parent=1 // pred_region
      %s17 = ssub.s32 512, 512
      %18 = vsyncadd [#allocation3], %s17
      %s19 = sshll.u32 [#allocation2], 4
      %s20 = int_to_ptr.vmem [resolvable:$true] %s19
      %25 = dma.hbm_to_vmem [thread:$0]  %s1, 512, %s20, [#allocation3], 128, 128, 8
    $region9: #{_lambda_.1} parent=1 // pred_fallthru
      _
    // Predicated region
    $region10: #{_lambda_.1} parent=1 // pred_check
      _
    $region11: #{_lambda_.1} parent=1 // pred_check_branch
      %27 = sbr.rel (0) target = $region13
    $region12: #{_lambda_.1} parent=1 // pred_region
      %s29 = ssub.s32 512, 512
      %30 = vsyncadd [#allocation5], %s29
      %s31 = sshll.u32 [#allocation4], 4
      %s32 = int_to_ptr.vmem [resolvable:$true] %s31
      %37 = dma.hbm_to_vmem [thread:$0]  %s2, 512, %s32, [#allocation5], 128, 128, 8
    $region13: #{_lambda_.1} parent=1 // pred_fallthru
      _
    // Predicated region
    $region14: #{_lambda_.1} parent=1 // pred_check
      _
    $region15: #{_lambda_.1} parent=1 // pred_check_branch
      %39 = sbr.rel (0) target = $region17
    $region16: #{_lambda_.1} parent=1 // pred_region
      %s41 = ssub.s32 256, 256
      %42 = vsyncadd [#allocation5], %s41
      %s43 = sshll.u32 [#allocation6], 4
      %s44 = int_to_ptr.vmem [resolvable:$true] %s43
      %49 = dma.hbm_to_vmem [thread:$0]  %s3, 256, %s44, [#allocation5], 128, 128, 8
    $region17: #{_lambda_.1} parent=1 // pred_fallthru
      _
    // Predicated region
    $region18: #{_lambda_.1} parent=1 // pred_check
      _
    $region19: #{_lambda_.1} parent=1 // pred_check_branch
      %51 = sbr.rel (0) target = $region21
    $region20: #{_lambda_.1} parent=1 // pred_region
      _
    $region21: #{_lambda_.1} parent=1 // pred_fallthru
      _
    // Predicated region
    $region22: #{_lambda_.1} parent=1 // pred_check
      _
    $region23: #{_lambda_.1} parent=1 // pred_check_branch
      %53 = sbr.rel (0) target = $region25
    $region24: #{_lambda_.1} parent=1 // pred_region
      %54 = dma.done [#allocation3], 512
    $region25: #{_lambda_.1} parent=1 // pred_fallthru
      _
    // Predicated region
    $region26: #{_lambda_.1} parent=1 // pred_check
      _
    $region27: #{_lambda_.1} parent=1 // pred_check_branch
      %56 = sbr.rel (0) target = $region29
    $region28: #{_lambda_.1} parent=1 // pred_region
      %57 = dma.done [#allocation5], 512
    $region29: #{_lambda_.1} parent=1 // pred_fallthru
      _
    // Predicated region
    $region30: #{_lambda_.1} parent=1 // pred_check
      _
    $region31: #{_lambda_.1} parent=1 // pred_check_branch
      %59 = sbr.rel (0) target = $region33
    $region32: #{_lambda_.1} parent=1 // pred_region
      %60 = dma.done [#allocation5], 256
    $region33: #{_lambda_.1} parent=1 // pred_fallthru
      _
    %v61 = vld [vmem:[%s0] sm:$0x3]
    %v62 = vld [vmem:[#allocation2] sm:$0xff]
    %v63 = vld [vmem:[#allocation2 + $0x8] sm:$0xff]
    %v64 = vld [vmem:[#allocation2 + $0x10] sm:$0xff]
    %v65 = vld [vmem:[#allocation2 + $0x18] sm:$0xff]
    %67 = vset.pattern.permute.xlu0 0
    %68 = vperm.xlu0 %67, %v62
    %v69 = vpop.permute.xlu0 %68
    %72 = vset.pattern.permute.xlu0 0
    %73 = vperm.xlu0 %72, %v63
    %v74 = vpop.permute.xlu0 %73
    %77 = vset.pattern.permute.xlu0 0
    %78 = vperm.xlu0 %77, %v64
    %v79 = vpop.permute.xlu0 %78
    %82 = vset.pattern.permute.xlu0 0
    %83 = vperm.xlu0 %82, %v65
    %v84 = vpop.permute.xlu0 %83
    %v86 = vlaneseq
    %v87 = vshrl.u32 %v86, 7
    %v88 = vsub.s32 0, %v87
    %v89 = vrot.slane %v61, %v88
    %v90 = vmul.f32 %v69, %v89
    %v91 = vmul.f32 %v74, %v89
    %v92 = vmul.f32 %v79, %v89
    %v93 = vmul.f32 %v84, %v89
    %94 = vset.pattern.permute.xlu0 1
    %95 = vperm.xlu0 %94, %v62
    %v96 = vpop.permute.xlu0 %95
    %98 = vset.pattern.permute.xlu0 1
    %99 = vperm.xlu0 %98, %v63
    %v100 = vpop.permute.xlu0 %99
    %102 = vset.pattern.permute.xlu0 1
    %103 = vperm.xlu0 %102, %v64
    %v104 = vpop.permute.xlu0 %103
    %106 = vset.pattern.permute.xlu0 1
    %107 = vperm.xlu0 %106, %v65
    %v108 = vpop.permute.xlu0 %107
    %v110 = vlaneseq
    %v111 = vshrl.u32 %v110, 7
    %v112 = vsub.s32 1, %v111
    %v113 = vrot.slane %v61, %v112
    %v114 = vmul.f32 %v96, %v113
    %v115 = vmul.f32 %v100, %v113
    %v116 = vmul.f32 %v104, %v113
    %v117 = vmul.f32 %v108, %v113
    %v118 = vadd.f32 %v90, %v114
    %v119 = vadd.f32 %v91, %v115
    %v120 = vadd.f32 %v92, %v116
    %v121 = vadd.f32 %v93, %v117
    %v122 = vld [vmem:[#allocation4] sm:$0xff]
    %v123 = vld [vmem:[#allocation4 + $0x8] sm:$0xff]
    %v124 = vld [vmem:[#allocation4 + $0x10] sm:$0xff]
    %v125 = vld [vmem:[#allocation4 + $0x18] sm:$0xff]
    %127 = vset.pattern.permute.xlu0 0
    %128 = vperm.xlu0 %127, %v122
    %v129 = vpop.permute.xlu0 %128
    %132 = vset.pattern.permute.xlu0 0
    %133 = vperm.xlu0 %132, %v123
    %v134 = vpop.permute.xlu0 %133
    %137 = vset.pattern.permute.xlu0 0
    %138 = vperm.xlu0 %137, %v124
    %v139 = vpop.permute.xlu0 %138
    %142 = vset.pattern.permute.xlu0 0
    %143 = vperm.xlu0 %142, %v125
    %v144 = vpop.permute.xlu0 %143
    %v146 = vadd.f32 %v118, %v129
    %v147 = vadd.f32 %v119, %v134
    %v148 = vadd.f32 %v120, %v139
    %v149 = vadd.f32 %v121, %v144
    %v150 = vmax.f32 %v146, 0.0
    %v151 = vmax.f32 %v147, 0.0
    %v152 = vmax.f32 %v148, 0.0
    %v153 = vmax.f32 %v149, 0.0
    %v154 = vand.u32 2147483647, %v146
    %v155 = vand.u32 2147483647, %v147
    %v156 = vand.u32 2147483647, %v148
    %v157 = vand.u32 2147483647, %v149
    %v158 = vsub.f32 0.0, %v154
    %v159 = vsub.f32 0.0, %v155
    %v160 = vsub.f32 0.0, %v156
    %v161 = vsub.f32 0.0, %v157
    %v162 = vmul.f32 %v158, 1.442695
    %v163 = vpow.pop %v162
    %v164 = vmul.f32 %v159, 1.442695
    %v165 = vpow.pop %v164
    %v166 = vmul.f32 %v160, 1.442695
    %v167 = vpow.pop %v166
    %v168 = vmul.f32 %v161, 1.442695
    %v169 = vpow.pop %v168
    %v170 = vadd.f32 %v163, 1.0
    %v171 = vlog2.pop %v170
    %v172 = vmul.f32 %v171, 0.6931472
    %v173 = vmul.f32 -0.5, %v163
    %v174 = vadd.f32 %v173, 1.0
    %v175 = vmul.f32 %v174, %v163
    %v176 = vand.u32 2147483647, %v163
    %vm177 = vcmp.lt.f32.partialorder %v176, 0.0004427343
    %v178 = vsel %vm177, %v175, %v172
    %v179 = vadd.f32 %v165, 1.0
    %v180 = vlog2.pop %v179
    %v181 = vmul.f32 %v180, 0.6931472
    %v182 = vmul.f32 -0.5, %v165
    %v183 = vadd.f32 %v182, 1.0
    %v184 = vmul.f32 %v183, %v165
    %v185 = vand.u32 2147483647, %v165
    %vm186 = vcmp.lt.f32.partialorder %v185, 0.0004427343
    %v187 = vsel %vm186, %v184, %v181
    %v188 = vadd.f32 %v167, 1.0
    %v189 = vlog2.pop %v188
    %v190 = vmul.f32 %v189, 0.6931472
    %v191 = vmul.f32 -0.5, %v167
    %v192 = vadd.f32 %v191, 1.0
    %v193 = vmul.f32 %v192, %v167
    %v194 = vand.u32 2147483647, %v167
    %vm195 = vcmp.lt.f32.partialorder %v194, 0.0004427343
    %v196 = vsel %vm195, %v193, %v190
    %v197 = vadd.f32 %v169, 1.0
    %v198 = vlog2.pop %v197
    %v199 = vmul.f32 %v198, 0.6931472
    %v200 = vmul.f32 -0.5, %v169
    %v201 = vadd.f32 %v200, 1.0
    %v202 = vmul.f32 %v201, %v169
    %v203 = vand.u32 2147483647, %v169
    %vm204 = vcmp.lt.f32.partialorder %v203, 0.0004427343
    %v205 = vsel %vm204, %v202, %v199
    %v206 = vadd.f32 %v150, %v178
    %v207 = vadd.f32 %v151, %v187
    %v208 = vadd.f32 %v152, %v196
    %v209 = vadd.f32 %v153, %v205
    %v210 = vld [vmem:[#allocation6] sm:$0xff]
    %v211 = vld [vmem:[#allocation6 + $0x8] sm:$0xff]
    %v212 = vld [vmem:[%s4] sm:$0xff]
    %v213 = vld [vmem:[%s4 + $0x8] sm:$0xff]
    %215 = vset.pattern.permute.xlu0 0
    %216 = vperm.xlu0 %215, %v212
    %v217 = vpop.permute.xlu0 %216
    %220 = vset.pattern.permute.xlu0 0
    %221 = vperm.xlu0 %220, %v213
    %v222 = vpop.permute.xlu0 %221
    %vm224 = vcmask 261120
    %v226 = vsel %vm224, %v210, 0
    %v229 = vsel %vm224, %v211, 0
    %231 = vmatprep.subr.mxu0 0.0
    %v232 = vand.u32 %v206, 4294901760
    %233 = vmatpush1.msra.mxu0 %v232
    %234 = vmatprep.subr.mxu0 0.0
    %v235 = vand.u32 %v207, 4294901760
    %236 = vmatpush1.msra.mxu0 %v235
    %237 = vmatprep.subr.mxu0 0.0
    %v238 = vand.u32 %v208, 4294901760
    %239 = vmatpush1.msra.mxu0 %v238
    %240 = vmatprep.subr.mxu0 0.0
    %v241 = vand.u32 %v209, 4294901760
    %242 = vmatpush1.msra.mxu0 %v241
    %243 = vmatprep.subr.mxu0 0.0
    %244 = vmatpush1.msra.mxu0 0.0
    %245 = vmatprep.subr.mxu0 0.0
    %246 = vmatpush1.msra.mxu0 0.0
    %247 = vmatprep.subr.mxu0 0.0
    %248 = vmatpush1.msra.mxu0 0.0
    %249 = vmatprep.subr.mxu0 0.0
    %250 = vmatpush1.msra.mxu0 0.0
    %251 = vmatprep.subr.mxu0 0.0
    %252 = vmatpush1.msra.mxu0 0.0
    %253 = vmatprep.subr.mxu0 0.0
    %254 = vmatpush1.msra.mxu0 0.0
    %255 = vmatprep.subr.mxu0 0.0
    %256 = vmatpush1.msra.mxu0 0.0
    %257 = vmatprep.subr.mxu0 0.0
    %258 = vmatpush1.msra.mxu0 0.0
    %259 = vmatprep.subr.mxu0 0.0
    %260 = vmatpush1.msra.mxu0 0.0
    %261 = vmatprep.subr.mxu0 0.0
    %262 = vmatpush1.msra.mxu0 0.0
    %263 = vmatprep.subr.mxu0 0.0
    %264 = vmatpush1.msra.mxu0 0.0
    %265 = vmatprep.subr.mxu0 0.0
    %266 = vmatpush1.msra.mxu0 0.0
    %267 = vmatprep.subr.mxu0 0.0
    %268 = vmatpush1.msra.mxu0 0.0
    %269 = vmatprep.subr.mxu0 0.0
    %270 = vmatpush1.msra.mxu0 0.0
    %271 = vmatprep.subr.mxu0 0.0
    %272 = vmatpush1.msra.mxu0 0.0
    %273 = vmatprep.subr.mxu0 0.0
    %274 = vmatpush1.msra.mxu0 0.0
    %275 = vmatprep.subr.mxu0 0.0
    %276 = vmatpush1.msra.mxu0 0.0
    %277 = vmatprep.subr.mxu0 0.0
    %278 = vmatpush1.msra.mxu0 0.0
    %279 = vmatprep.subr.mxu0 0.0
    %280 = vmatpush1.msra.mxu0 0.0
    %281 = vmatprep.subr.mxu0 0.0
    %282 = vmatpush1.msra.mxu0 0.0
    %283 = vmatprep.subr.mxu0 0.0
    %284 = vmatpush1.msra.mxu0 0.0
    %285 = vmatprep.subr.mxu0 0.0
    %286 = vmatpush1.msra.mxu0 0.0
    %287 = vmatprep.subr.mxu0 0.0
    %288 = vmatpush1.msra.mxu0 0.0
    %289 = vmatprep.subr.mxu0 0.0
    %290 = vmatpush1.msra.mxu0 0.0
    %291 = vmatprep.subr.mxu0 0.0
    %292 = vmatpush1.msra.mxu0 0.0
    %293 = vmatprep.subr.mxu0 0.0
    %294 = vmatpush1.msra.mxu0 0.0
    %295 = vmatprep.subr.mxu0 0.0
    %296 = vmatpush1.msra.mxu0 0.0
    %297 = vmatprep.subr.mxu0 0.0
    %298 = vmatpush1.msra.mxu0 0.0
    %299 = vmatprep.mubr.f32.mxu0 0.0
    %v300 = vand.u32 %v226, 4294901760
    %v301 = vsub.f32 %v226, %v300
    %v302 = vand.u32 %v301, 4294901760
    %v303 = vsub.f32 %v301, %v302
    %v304 = vand.u32 %v303, 4294901760
    %305 = vmatmul.mubr.f32.gmra.mrb[0].mxu0 %v304
    %v306 = vpop.f32.mrb[0].mxu0
    %v307 = vadd.f32 %v217, %v306
    %v308 = vpop.f32.mrb[0].mxu0
    %309 = vmatprep.mubr.f32.mxu0 0.0
    %v310 = vand.u32 %v229, 4294901760
    %v311 = vsub.f32 %v229, %v310
    %v312 = vand.u32 %v311, 4294901760
    %v313 = vsub.f32 %v311, %v312
    %v314 = vand.u32 %v313, 4294901760
    %315 = vmatmul.mubr.f32.gmra.mrb[0].mxu0 %v314
    %v316 = vpop.f32.mrb[0].mxu0
    %v317 = vadd.f32 %v222, %v316
    %v318 = vpop.f32.mrb[0].mxu0
    %319 = vdwg.mxu0
    %320 = vmatprep.subr.mxu0 0.0
    %v321 = vand.u32 %v206, 4294901760
    %v322 = vsub.f32 %v206, %v321
    %v323 = vand.u32 %v322, 4294901760
    %v324 = vsub.f32 %v322, %v323
    %v325 = vand.u32 %v324, 4294901760
    %326 = vmatpush1.msra.mxu0 %v325
    %327 = vmatprep.subr.mxu0 0.0
    %v328 = vand.u32 %v207, 4294901760
    %v329 = vsub.f32 %v207, %v328
    %v330 = vand.u32 %v329, 4294901760
    %v331 = vsub.f32 %v329, %v330
    %v332 = vand.u32 %v331, 4294901760
    %333 = vmatpush1.msra.mxu0 %v332
    %334 = vmatprep.subr.mxu0 0.0
    %v335 = vand.u32 %v208, 4294901760
    %v336 = vsub.f32 %v208, %v335
    %v337 = vand.u32 %v336, 4294901760
    %v338 = vsub.f32 %v336, %v337
    %v339 = vand.u32 %v338, 4294901760
    %340 = vmatpush1.msra.mxu0 %v339
    %341 = vmatprep.subr.mxu0 0.0
    %v342 = vand.u32 %v209, 4294901760
    %v343 = vsub.f32 %v209, %v342
    %v344 = vand.u32 %v343, 4294901760
    %v345 = vsub.f32 %v343, %v344
    %v346 = vand.u32 %v345, 4294901760
    %347 = vmatpush1.msra.mxu0 %v346
    %348 = vmatprep.subr.mxu0 0.0
    %349 = vmatpush1.msra.mxu0 0.0
    %350 = vmatprep.subr.mxu0 0.0
    %351 = vmatpush1.msra.mxu0 0.0
    %352 = vmatprep.subr.mxu0 0.0
    %353 = vmatpush1.msra.mxu0 0.0
    %354 = vmatprep.subr.mxu0 0.0
    %355 = vmatpush1.msra.mxu0 0.0
    %356 = vmatprep.subr.mxu0 0.0
    %357 = vmatpush1.msra.mxu0 0.0
    %358 = vmatprep.subr.mxu0 0.0
    %359 = vmatpush1.msra.mxu0 0.0
    %360 = vmatprep.subr.mxu0 0.0
    %361 = vmatpush1.msra.mxu0 0.0
    %362 = vmatprep.subr.mxu0 0.0
    %363 = vmatpush1.msra.mxu0 0.0
    %364 = vmatprep.subr.mxu0 0.0
    %365 = vmatpush1.msra.mxu0 0.0
    %366 = vmatprep.subr.mxu0 0.0
    %367 = vmatpush1.msra.mxu0 0.0
    %368 = vmatprep.subr.mxu0 0.0
    %369 = vmatpush1.msra.mxu0 0.0
    %370 = vmatprep.subr.mxu0 0.0
    %371 = vmatpush1.msra.mxu0 0.0
    %372 = vmatprep.subr.mxu0 0.0
    %373 = vmatpush1.msra.mxu0 0.0
    %374 = vmatprep.subr.mxu0 0.0
    %375 = vmatpush1.msra.mxu0 0.0
    %376 = vmatprep.subr.mxu0 0.0
    %377 = vmatpush1.msra.mxu0 0.0
    %378 = vmatprep.subr.mxu0 0.0
    %379 = vmatpush1.msra.mxu0 0.0
    %380 = vmatprep.subr.mxu0 0.0
    %381 = vmatpush1.msra.mxu0 0.0
    %382 = vmatprep.subr.mxu0 0.0
    %383 = vmatpush1.msra.mxu0 0.0
    %384 = vmatprep.subr.mxu0 0.0
    %385 = vmatpush1.msra.mxu0 0.0
    %386 = vmatprep.subr.mxu0 0.0
    %387 = vmatpush1.msra.mxu0 0.0
    %388 = vmatprep.subr.mxu0 0.0
    %389 = vmatpush1.msra.mxu0 0.0
    %390 = vmatprep.subr.mxu0 0.0
    %391 = vmatpush1.msra.mxu0 0.0
    %392 = vmatprep.subr.mxu0 0.0
    %393 = vmatpush1.msra.mxu0 0.0
    %394 = vmatprep.subr.mxu0 0.0
    %395 = vmatpush1.msra.mxu0 0.0
    %396 = vmatprep.subr.mxu0 0.0
    %397 = vmatpush1.msra.mxu0 0.0
    %398 = vmatprep.subr.mxu0 0.0
    %399 = vmatpush1.msra.mxu0 0.0
    %400 = vmatprep.subr.mxu0 0.0
    %401 = vmatpush1.msra.mxu0 0.0
    %402 = vmatprep.subr.mxu0 0.0
    %403 = vmatpush1.msra.mxu0 0.0
    %404 = vmatprep.mubr.f32.mxu0 0.0
    %v405 = vand.u32 %v226, 4294901760
    %406 = vmatmul.mubr.f32.gmra.mrb[0].mxu0 %v405
    %v407 = vpop.f32.mrb[0].mxu0
    %v408 = vadd.f32 %v307, %v407
    %v409 = vpop.f32.mrb[0].mxu0
    %410 = vmatprep.mubr.f32.mxu0 0.0
    %v411 = vand.u32 %v229, 4294901760
    %412 = vmatmul.mubr.f32.gmra.mrb[0].mxu0 %v411
    %v413 = vpop.f32.mrb[0].mxu0
    %v414 = vadd.f32 %v317, %v413
    %v415 = vpop.f32.mrb[0].mxu0
    %416 = vdwg.mxu0
    %417 = vmatprep.subr.mxu0 0.0
    %v418 = vand.u32 %v206, 4294901760
    %v419 = vsub.f32 %v206, %v418
    %420 = vmatpush1.msra.mxu0 %v419
    %421 = vmatprep.subr.mxu0 0.0
    %v422 = vand.u32 %v207, 4294901760
    %v423 = vsub.f32 %v207, %v422
    %424 = vmatpush1.msra.mxu0 %v423
    %425 = vmatprep.subr.mxu0 0.0
    %v426 = vand.u32 %v208, 4294901760
    %v427 = vsub.f32 %v208, %v426
    %428 = vmatpush1.msra.mxu0 %v427
    %429 = vmatprep.subr.mxu0 0.0
    %v430 = vand.u32 %v209, 4294901760
    %v431 = vsub.f32 %v209, %v430
    %432 = vmatpush1.msra.mxu0 %v431
    %433 = vmatprep.subr.mxu0 0.0
    %434 = vmatpush1.msra.mxu0 0.0
    %435 = vmatprep.subr.mxu0 0.0
    %436 = vmatpush1.msra.mxu0 0.0
    %437 = vmatprep.subr.mxu0 0.0
    %438 = vmatpush1.msra.mxu0 0.0
    %439 = vmatprep.subr.mxu0 0.0
    %440 = vmatpush1.msra.mxu0 0.0
    %441 = vmatprep.subr.mxu0 0.0
    %442 = vmatpush1.msra.mxu0 0.0
    %443 = vmatprep.subr.mxu0 0.0
    %444 = vmatpush1.msra.mxu0 0.0
    %445 = vmatprep.subr.mxu0 0.0
    %446 = vmatpush1.msra.mxu0 0.0
    %447 = vmatprep.subr.mxu0 0.0
    %448 = vmatpush1.msra.mxu0 0.0
    %449 = vmatprep.subr.mxu0 0.0
    %450 = vmatpush1.msra.mxu0 0.0
    %451 = vmatprep.subr.mxu0 0.0
    %452 = vmatpush1.msra.mxu0 0.0
    %453 = vmatprep.subr.mxu0 0.0
    %454 = vmatpush1.msra.mxu0 0.0
    %455 = vmatprep.subr.mxu0 0.0
    %456 = vmatpush1.msra.mxu0 0.0
    %457 = vmatprep.subr.mxu0 0.0
    %458 = vmatpush1.msra.mxu0 0.0
    %459 = vmatprep.subr.mxu0 0.0
    %460 = vmatpush1.msra.mxu0 0.0
    %461 = vmatprep.subr.mxu0 0.0
    %462 = vmatpush1.msra.mxu0 0.0
    %463 = vmatprep.subr.mxu0 0.0
    %464 = vmatpush1.msra.mxu0 0.0
    %465 = vmatprep.subr.mxu0 0.0
    %466 = vmatpush1.msra.mxu0 0.0
    %467 = vmatprep.subr.mxu0 0.0
    %468 = vmatpush1.msra.mxu0 0.0
    %469 = vmatprep.subr.mxu0 0.0
    %470 = vmatpush1.msra.mxu0 0.0
    %471 = vmatprep.subr.mxu0 0.0
    %472 = vmatpush1.msra.mxu0 0.0
    %473 = vmatprep.subr.mxu0 0.0
    %474 = vmatpush1.msra.mxu0 0.0
    %475 = vmatprep.subr.mxu0 0.0
    %476 = vmatpush1.msra.mxu0 0.0
    %477 = vmatprep.subr.mxu0 0.0
    %478 = vmatpush1.msra.mxu0 0.0
    %479 = vmatprep.subr.mxu0 0.0
    %480 = vmatpush1.msra.mxu0 0.0
    %481 = vmatprep.subr.mxu0 0.0
    %482 = vmatpush1.msra.mxu0 0.0
    %483 = vmatprep.subr.mxu0 0.0
    %484 = vmatpush1.msra.mxu0 0.0
    %485 = vmatprep.subr.mxu0 0.0
    %486 = vmatpush1.msra.mxu0 0.0
    %487 = vmatprep.subr.mxu0 0.0
    %488 = vmatpush1.msra.mxu0 0.0
    %489 = vmatprep.mubr.f32.mxu0 0.0
    %v490 = vand.u32 %v226, 4294901760
    %v491 = vsub.f32 %v226, %v490
    %492 = vmatmul.mubr.f32.gmra.mrb[0].mxu0 %v491
    %v493 = vpop.f32.mrb[0].mxu0
    %v494 = vadd.f32 %v408, %v493
    %v495 = vpop.f32.mrb[0].mxu0
    %496 = vmatprep.mubr.f32.mxu0 0.0
    %v497 = vand.u32 %v229, 4294901760
    %v498 = vsub.f32 %v229, %v497
    %499 = vmatmul.mubr.f32.gmra.mrb[0].mxu0 %v498
    %v500 = vpop.f32.mrb[0].mxu0
    %v501 = vadd.f32 %v414, %v500
    %v502 = vpop.f32.mrb[0].mxu0
    %503 = vdwg.mxu0
    %504 = vmatprep.subr.mxu0 0.0
    %v505 = vand.u32 %v206, 4294901760
    %506 = vmatpush1.msra.mxu0 %v505
    %507 = vmatprep.subr.mxu0 0.0
    %v508 = vand.u32 %v207, 4294901760
    %509 = vmatpush1.msra.mxu0 %v508
    %510 = vmatprep.subr.mxu0 0.0
    %v511 = vand.u32 %v208, 4294901760
    %512 = vmatpush1.msra.mxu0 %v511
    %513 = vmatprep.subr.mxu0 0.0
    %v514 = vand.u32 %v209, 4294901760
    %515 = vmatpush1.msra.mxu0 %v514
    %516 = vmatprep.subr.mxu0 0.0
    %517 = vmatpush1.msra.mxu0 0.0
    %518 = vmatprep.subr.mxu0 0.0
    %519 = vmatpush1.msra.mxu0 0.0
    %520 = vmatprep.subr.mxu0 0.0
    %521 = vmatpush1.msra.mxu0 0.0
    %522 = vmatprep.subr.mxu0 0.0
    %523 = vmatpush1.msra.mxu0 0.0
    %524 = vmatprep.subr.mxu0 0.0
    %525 = vmatpush1.msra.mxu0 0.0
    %526 = vmatprep.subr.mxu0 0.0
    %527 = vmatpush1.msra.mxu0 0.0
    %528 = vmatprep.subr.mxu0 0.0
    %529 = vmatpush1.msra.mxu0 0.0
    %530 = vmatprep.subr.mxu0 0.0
    %531 = vmatpush1.msra.mxu0 0.0
    %532 = vmatprep.subr.mxu0 0.0
    %533 = vmatpush1.msra.mxu0 0.0
    %534 = vmatprep.subr.mxu0 0.0
    %535 = vmatpush1.msra.mxu0 0.0
    %536 = vmatprep.subr.mxu0 0.0
    %537 = vmatpush1.msra.mxu0 0.0
    %538 = vmatprep.subr.mxu0 0.0
    %539 = vmatpush1.msra.mxu0 0.0
    %540 = vmatprep.subr.mxu0 0.0
    %541 = vmatpush1.msra.mxu0 0.0
    %542 = vmatprep.subr.mxu0 0.0
    %543 = vmatpush1.msra.mxu0 0.0
    %544 = vmatprep.subr.mxu0 0.0
    %545 = vmatpush1.msra.mxu0 0.0
    %546 = vmatprep.subr.mxu0 0.0
    %547 = vmatpush1.msra.mxu0 0.0
    %548 = vmatprep.subr.mxu0 0.0
    %549 = vmatpush1.msra.mxu0 0.0
    %550 = vmatprep.subr.mxu0 0.0
    %551 = vmatpush1.msra.mxu0 0.0
    %552 = vmatprep.subr.mxu0 0.0
    %553 = vmatpush1.msra.mxu0 0.0
    %554 = vmatprep.subr.mxu0 0.0
    %555 = vmatpush1.msra.mxu0 0.0
    %556 = vmatprep.subr.mxu0 0.0
    %557 = vmatpush1.msra.mxu0 0.0
    %558 = vmatprep.subr.mxu0 0.0
    %559 = vmatpush1.msra.mxu0 0.0
    %560 = vmatprep.subr.mxu0 0.0
    %561 = vmatpush1.msra.mxu0 0.0
    %562 = vmatprep.subr.mxu0 0.0
    %563 = vmatpush1.msra.mxu0 0.0
    %564 = vmatprep.subr.mxu0 0.0
    %565 = vmatpush1.msra.mxu0 0.0
    %566 = vmatprep.subr.mxu0 0.0
    %567 = vmatpush1.msra.mxu0 0.0
    %568 = vmatprep.subr.mxu0 0.0
    %569 = vmatpush1.msra.mxu0 0.0
    %570 = vmatprep.subr.mxu0 0.0
    %571 = vmatpush1.msra.mxu0 0.0
    %572 = vmatprep.mubr.f32.mxu0 0.0
    %v573 = vand.u32 %v226, 4294901760
    %v574 = vsub.f32 %v226, %v573
    %v575 = vand.u32 %v574, 4294901760
    %576 = vmatmul.mubr.f32.gmra.mrb[0].mxu0 %v575
    %v577 = vpop.f32.mrb[0].mxu0
    %v578 = vadd.f32 %v494, %v577
    %v579 = vpop.f32.mrb[0].mxu0
    %580 = vmatprep.mubr.f32.mxu0 0.0
    %v581 = vand.u32 %v229, 4294901760
    %v582 = vsub.f32 %v229, %v581
    %v583 = vand.u32 %v582, 4294901760
    %584 = vmatmul.mubr.f32.gmra.mrb[0].mxu0 %v583
    %v585 = vpop.f32.mrb[0].mxu0
    %v586 = vadd.f32 %v501, %v585
    %v587 = vpop.f32.mrb[0].mxu0
    %588 = vdwg.mxu0
    %589 = vmatprep.subr.mxu0 0.0
    %v590 = vand.u32 %v206, 4294901760
    %v591 = vsub.f32 %v206, %v590
    %v592 = vand.u32 %v591, 4294901760
    %593 = vmatpush1.msra.mxu0 %v592
    %594 = vmatprep.subr.mxu0 0.0
    %v595 = vand.u32 %v207, 4294901760
    %v596 = vsub.f32 %v207, %v595
    %v597 = vand.u32 %v596, 4294901760
    %598 = vmatpush1.msra.mxu0 %v597
    %599 = vmatprep.subr.mxu0 0.0
    %v600 = vand.u32 %v208, 4294901760
    %v601 = vsub.f32 %v208, %v600
    %v602 = vand.u32 %v601, 4294901760
    %603 = vmatpush1.msra.mxu0 %v602
    %604 = vmatprep.subr.mxu0 0.0
    %v605 = vand.u32 %v209, 4294901760
    %v606 = vsub.f32 %v209, %v605
    %v607 = vand.u32 %v606, 4294901760
    %608 = vmatpush1.msra.mxu0 %v607
    %609 = vmatprep.subr.mxu0 0.0
    %610 = vmatpush1.msra.mxu0 0.0
    %611 = vmatprep.subr.mxu0 0.0
    %612 = vmatpush1.msra.mxu0 0.0
    %613 = vmatprep.subr.mxu0 0.0
    %614 = vmatpush1.msra.mxu0 0.0
    %615 = vmatprep.subr.mxu0 0.0
    %616 = vmatpush1.msra.mxu0 0.0
    %617 = vmatprep.subr.mxu0 0.0
    %618 = vmatpush1.msra.mxu0 0.0
    %619 = vmatprep.subr.mxu0 0.0
    %620 = vmatpush1.msra.mxu0 0.0
    %621 = vmatprep.subr.mxu0 0.0
    %622 = vmatpush1.msra.mxu0 0.0
    %623 = vmatprep.subr.mxu0 0.0
    %624 = vmatpush1.msra.mxu0 0.0
    %625 = vmatprep.subr.mxu0 0.0
    %626 = vmatpush1.msra.mxu0 0.0
    %627 = vmatprep.subr.mxu0 0.0
    %628 = vmatpush1.msra.mxu0 0.0
    %629 = vmatprep.subr.mxu0 0.0
    %630 = vmatpush1.msra.mxu0 0.0
    %631 = vmatprep.subr.mxu0 0.0
    %632 = vmatpush1.msra.mxu0 0.0
    %633 = vmatprep.subr.mxu0 0.0
    %634 = vmatpush1.msra.mxu0 0.0
    %635 = vmatprep.subr.mxu0 0.0
    %636 = vmatpush1.msra.mxu0 0.0
    %637 = vmatprep.subr.mxu0 0.0
    %638 = vmatpush1.msra.mxu0 0.0
    %639 = vmatprep.subr.mxu0 0.0
    %640 = vmatpush1.msra.mxu0 0.0
    %641 = vmatprep.subr.mxu0 0.0
    %642 = vmatpush1.msra.mxu0 0.0
    %643 = vmatprep.subr.mxu0 0.0
    %644 = vmatpush1.msra.mxu0 0.0
    %645 = vmatprep.subr.mxu0 0.0
    %646 = vmatpush1.msra.mxu0 0.0
    %647 = vmatprep.subr.mxu0 0.0
    %648 = vmatpush1.msra.mxu0 0.0
    %649 = vmatprep.subr.mxu0 0.0
    %650 = vmatpush1.msra.mxu0 0.0
    %651 = vmatprep.subr.mxu0 0.0
    %652 = vmatpush1.msra.mxu0 0.0
    %653 = vmatprep.subr.mxu0 0.0
    %654 = vmatpush1.msra.mxu0 0.0
    %655 = vmatprep.subr.mxu0 0.0
    %656 = vmatpush1.msra.mxu0 0.0
    %657 = vmatprep.subr.mxu0 0.0
    %658 = vmatpush1.msra.mxu0 0.0
    %659 = vmatprep.subr.mxu0 0.0
    %660 = vmatpush1.msra.mxu0 0.0
    %661 = vmatprep.subr.mxu0 0.0
    %662 = vmatpush1.msra.mxu0 0.0
    %663 = vmatprep.subr.mxu0 0.0
    %664 = vmatpush1.msra.mxu0 0.0
    %665 = vmatprep.mubr.f32.mxu0 0.0
    %v666 = vand.u32 %v226, 4294901760
    %667 = vmatmul.mubr.f32.gmra.mrb[0].mxu0 %v666
    %v668 = vpop.f32.mrb[0].mxu0
    %v669 = vadd.f32 %v578, %v668
    %v670 = vpop.f32.mrb[0].mxu0
    %671 = vmatprep.mubr.f32.mxu0 0.0
    %v672 = vand.u32 %v229, 4294901760
    %673 = vmatmul.mubr.f32.gmra.mrb[0].mxu0 %v672
    %v674 = vpop.f32.mrb[0].mxu0
    %v675 = vadd.f32 %v586, %v674
    %v676 = vpop.f32.mrb[0].mxu0
    %677 = vdwg.mxu0
    %678 = vmatprep.subr.mxu0 0.0
    %v679 = vand.u32 %v206, 4294901760
    %680 = vmatpush1.msra.mxu0 %v679
    %681 = vmatprep.subr.mxu0 0.0
    %v682 = vand.u32 %v207, 4294901760
    %683 = vmatpush1.msra.mxu0 %v682
    %684 = vmatprep.subr.mxu0 0.0
    %v685 = vand.u32 %v208, 4294901760
    %686 = vmatpush1.msra.mxu0 %v685
    %687 = vmatprep.subr.mxu0 0.0
    %v688 = vand.u32 %v209, 4294901760
    %689 = vmatpush1.msra.mxu0 %v688
    %690 = vmatprep.subr.mxu0 0.0
    %691 = vmatpush1.msra.mxu0 0.0
    %692 = vmatprep.subr.mxu0 0.0
    %693 = vmatpush1.msra.mxu0 0.0
    %694 = vmatprep.subr.mxu0 0.0
    %695 = vmatpush1.msra.mxu0 0.0
    %696 = vmatprep.subr.mxu0 0.0
    %697 = vmatpush1.msra.mxu0 0.0
    %698 = vmatprep.subr.mxu0 0.0
    %699 = vmatpush1.msra.mxu0 0.0
    %700 = vmatprep.subr.mxu0 0.0
    %701 = vmatpush1.msra.mxu0 0.0
    %702 = vmatprep.subr.mxu0 0.0
    %703 = vmatpush1.msra.mxu0 0.0
    %704 = vmatprep.subr.mxu0 0.0
    %705 = vmatpush1.msra.mxu0 0.0
    %706 = vmatprep.subr.mxu0 0.0
    %707 = vmatpush1.msra.mxu0 0.0
    %708 = vmatprep.subr.mxu0 0.0
    %709 = vmatpush1.msra.mxu0 0.0
    %710 = vmatprep.subr.mxu0 0.0
    %711 = vmatpush1.msra.mxu0 0.0
    %712 = vmatprep.subr.mxu0 0.0
    %713 = vmatpush1.msra.mxu0 0.0
    %714 = vmatprep.subr.mxu0 0.0
    %715 = vmatpush1.msra.mxu0 0.0
    %716 = vmatprep.subr.mxu0 0.0
    %717 = vmatpush1.msra.mxu0 0.0
    %718 = vmatprep.subr.mxu0 0.0
    %719 = vmatpush1.msra.mxu0 0.0
    %720 = vmatprep.subr.mxu0 0.0
    %721 = vmatpush1.msra.mxu0 0.0
    %722 = vmatprep.subr.mxu0 0.0
    %723 = vmatpush1.msra.mxu0 0.0
    %724 = vmatprep.subr.mxu0 0.0
    %725 = vmatpush1.msra.mxu0 0.0
    %726 = vmatprep.subr.mxu0 0.0
    %727 = vmatpush1.msra.mxu0 0.0
    %728 = vmatprep.subr.mxu0 0.0
    %729 = vmatpush1.msra.mxu0 0.0
    %730 = vmatprep.subr.mxu0 0.0
    %731 = vmatpush1.msra.mxu0 0.0
    %732 = vmatprep.subr.mxu0 0.0
    %733 = vmatpush1.msra.mxu0 0.0
    %734 = vmatprep.subr.mxu0 0.0
    %735 = vmatpush1.msra.mxu0 0.0
    %736 = vmatprep.subr.mxu0 0.0
    %737 = vmatpush1.msra.mxu0 0.0
    %738 = vmatprep.subr.mxu0 0.0
    %739 = vmatpush1.msra.mxu0 0.0
    %740 = vmatprep.subr.mxu0 0.0
    %741 = vmatpush1.msra.mxu0 0.0
    %742 = vmatprep.subr.mxu0 0.0
    %743 = vmatpush1.msra.mxu0 0.0
    %744 = vmatprep.subr.mxu0 0.0
    %745 = vmatpush1.msra.mxu0 0.0
    %746 = vmatprep.mubr.f32.mxu0 0.0
    %v747 = vand.u32 %v226, 4294901760
    %748 = vmatmul.mubr.f32.gmra.mrb[0].mxu0 %v747
    %v749 = vpop.f32.mrb[0].mxu0
    %v750 = vadd.f32 %v669, %v749
    %v751 = vpop.f32.mrb[0].mxu0
    %752 = vmatprep.mubr.f32.mxu0 0.0
    %v753 = vand.u32 %v229, 4294901760
    %754 = vmatmul.mubr.f32.gmra.mrb[0].mxu0 %v753
    %v755 = vpop.f32.mrb[0].mxu0
    %v756 = vadd.f32 %v675, %v755
    %v757 = vpop.f32.mrb[0].mxu0
    %758 = vdwg.mxu0
    %759 = vst [vmem:[%s5] sm:$0xff] %v750
    %v760 = vmul.f32 %v756, 1.442695
    %v761 = vpow.pop %v760
    %762 = vst [vmem:[%s5 + $0x8] sm:$0xff] %v761
    // Predicated region
    $region34: #{_lambda_.1} parent=1 // pred_check
      _
    $region35: #{_lambda_.1} parent=1 // pred_check_branch
      %764 = sbr.rel (0) target = $region37
    $region36: #{_lambda_.1} parent=1 // pred_region
      _
    $region37: #{_lambda_.1} parent=1 // pred_fallthru
      _
    // Predicated region
    $region38: #{_lambda_.1} parent=1 // pred_check
      _
    $region39: #{_lambda_.1} parent=1 // pred_check_branch
      %766 = sbr.rel (0) target = $region41
    $region40: #{_lambda_.1} parent=1 // pred_region
      _
    $region41: #{_lambda_.1} parent=1 // pred_fallthru
      _
    %767 = vsyncpa [#allocation3], 1
    %768 = vsyncpa [#allocation5], 1

</llo_original>
